<compile_context>
chip_gen: v7x
topology: tpu7x:2x2x1
jax: 0.10.0
libtpu: 0.0.40
codegen_flags: <defaults>
</compile_context>

<pallas_src>
import functools

import jax
import jax.numpy as jnp
import numpy as np
from jax import lax
from jax.experimental import pallas as pl
from jax.experimental.pallas import tpu as pltpu

LN_EPS = 1e-5


def _layer_step(x, mod, w):
    """One fused MLPblock on an f32 (ts, D) tile.

    mod rows (folded in the wrapper):
      0: shiftA = lnb*(1+scale) + shift
      1: scaleA = lnw*(1+scale)
      2: gate
      3: gbias  = gate * b_fc
    """
    shiftA = mod[0:1, :]
    scaleA = mod[1:2, :]
    gate = mod[2:3, :]
    gbias = mod[3:4, :]

    # LayerNorm over the feature dim (single-pass variance, clamped against cancellation).
    mu = jnp.mean(x, axis=-1, keepdims=True)
    var = jnp.maximum(jnp.mean(x * x, axis=-1, keepdims=True) - mu * mu, 0.0)
    xn = (x - mu) * lax.rsqrt(var + LN_EPS)

    # modulate() with the LayerNorm affine folded in.
    xm = xn * scaleA + shiftA

    # fc0: bf16 MXU matmul with f32 accumulation (weights pre-transposed in the wrapper).
    mm = jnp.dot(xm.astype(w.dtype), w, preferred_element_type=jnp.float32)

    # x += gate * fc0(x_mod)   (fc bias folded into gbias)
    return x + gate * mm + gbias


def _kernel_inplace(x_ref, mod_ref, w_ref, o_ref, *, weights_resident):
    """f32 path: the resident output block doubles as the residual accumulator."""
    l = pl.program_id(2)

    @pl.when(l == 0)
    def _():
        o_ref[...] = x_ref[...]

    w = w_ref[l] if weights_resident else w_ref[...]
    o_ref[...] = _layer_step(o_ref[...], mod_ref[...], w)


def _kernel_scratch(x_ref, mod_ref, w_ref, o_ref, acc_ref, *, weights_resident):
    """Sub-f32 path: residual kept in an f32 VMEM scratch, cast once on the last layer."""
    l = pl.program_id(2)

    @pl.when(l == 0)
    def _():
        acc_ref[...] = x_ref[...].astype(jnp.float32)

    w = w_ref[l] if weights_resident else w_ref[...]
    acc_ref[...] = _layer_step(acc_ref[...], mod_ref[...], w)

    @pl.when(l == pl.num_programs(2) - 1)
    def _():
        o_ref[...] = acc_ref[...].astype(o_ref.dtype)


def prepare_params(params):
    """One-time parameter preprocessing (call once, outside the per-step forward)."""
    lnw, lnb, wada, bada, wfc, bfc = params
    # Pre-transpose + bf16-cast fc0 weights so the kernel never transposes:
    #   x @ wfc_t[l] == x @ wfc[l].T
    wfc_t = jnp.swapaxes(wfc, 1, 2).astype(jnp.bfloat16)
    return {"lnw": lnw, "lnb": lnb, "wada": wada, "bada": bada, "wfc_t": wfc_t, "bfc": bfc}


def transmlp_forward(x, y, prep, *, max_rows=1024):
    lnw, lnb = prep["lnw"], prep["lnb"]
    wada, bada = prep["wada"], prep["bada"]
    wfc_t, bfc = prep["wfc_t"], prep["bfc"]

    B, S, D = x.shape
    L = lnw.shape[0]

    # ---- hoisted adaLN branch: one batched matmul over all (L, B) ----------------------
    # Kept f32 to match the reference; in production cast h/wada to bf16 to halve the adaLN
    # weight read if ~1e-3 relative error on the modulation rows is acceptable.
    h = y.astype(jnp.float32)
    h = h * jax.nn.sigmoid(h)                                           # SiLU
    ada = jnp.einsum("bd,lkd->lbk", h, wada.astype(jnp.float32),
                     preferred_element_type=jnp.float32) + bada[:, None, :]   # (L, B, 3D)
    ada = ada.reshape(L, B, 3, D)
    shift, scale, gate = ada[:, :, 0], ada[:, :, 1], ada[:, :, 2]
    scale1 = 1.0 + scale

    # ---- fold LayerNorm affine + fc bias into the modulation rows ----------------------
    scaleA = lnw[:, None, :] * scale1                    # (L, B, D)
    shiftA = lnb[:, None, :] * scale1 + shift            # (L, B, D)
    gbias = gate * bfc[:, None, :]                       # (L, B, D)
    mod = jnp.stack([shiftA, scaleA, gate, gbias], axis=2)      # (L, B, 4, D)
    mod = jnp.pad(mod, ((0, 0), (0, 0), (0, 4), (0, 0)))        # pad 4 -> 8 sublanes

    # ---- row tiling (within one batch; full S or a multiple-of-256 tile) ---------------
    if S <= max_rows:
        ts = S                                   # block == full dim: always layout-legal
    else:
        ts = max(256, (max_rows // 256) * 256)   # MXU-friendly M (multiple of 8/128/256)
    St = pl.cdiv(S, ts)

    inplace = x.dtype == jnp.float32

    # ---- VMEM budget (actual buffer sums; Pallas double-buffers each stream) -----------
    VMEM_CAP = 56 * 1024 * 1024   # < v7x 64 MiB physical; v5e/v6e (128 MiB) may raise this
    itemsize = x.dtype.itemsize
    stream_bytes = 2 * (ts * D * itemsize        # x blocks
                        + ts * D * itemsize      # out blocks (residual accumulator)
                        + 8 * D * 4)             # folded modulation rows
    acc_bytes = 0 if inplace else ts * D * 4
    w_all = L * D * D * 2                        # all-layer bf16 fc0 weights
    weights_resident = stream_bytes + acc_bytes + 2 * w_all <= VMEM_CAP
    w_bytes = 2 * (w_all if weights_resident else D * D * 2)
    vmem_limit = int(min(VMEM_CAP,
                         max(32 * 1024 * 1024,
                             stream_bytes + acc_bytes + w_bytes + 4 * 1024 * 1024)))

    if weights_resident:
        # Constant index_map -> the (L, D, D) weight slab is DMA'd once and reused.
        w_spec = pl.BlockSpec((L, D, D), lambda b, s, l: (0, 0, 0))
    else:
        w_spec = pl.BlockSpec((None, D, D), lambda b, s, l: (l, 0, 0))

    in_specs = [
        pl.BlockSpec((None, ts, D), lambda b, s, l: (b, s, 0)),          # x rows
        pl.BlockSpec((None, None, 8, D), lambda b, s, l: (l, b, 0, 0)),  # folded modulation
        w_spec,                                                          # fc0 W^T (bf16)
    ]
    out_spec = pl.BlockSpec((None, ts, D), lambda b, s, l: (b, s, 0))

    if inplace:
        kernel = functools.partial(_kernel_inplace, weights_resident=weights_resident)
        scratch = []
    else:
        kernel = functools.partial(_kernel_scratch, weights_resident=weights_resident)
        scratch = [pltpu.VMEM((ts, D), jnp.float32)]

    return pl.pallas_call(
        kernel,
        out_shape=jax.ShapeDtypeStruct((B, S, D), x.dtype),
        grid_spec=pltpu.PrefetchScalarGridSpec(
            num_scalar_prefetch=0,
            grid=(B, St, L),
            in_specs=in_specs,
            out_specs=out_spec,
            scratch_shapes=scratch,
        ),
        compiler_params=pltpu.CompilerParams(
            # On v7x, pltpu.CORE_PARALLEL on the batch/row axes would shard row tiles across
            # both TensorCores; kept as plain "parallel" for portability across generations.
            dimension_semantics=("parallel", "parallel", "arbitrary"),
            vmem_limit_bytes=vmem_limit,
        ),
    )(x, mod, wfc_t)


def transmlp_reference(x, y, params):
    """Pure-JAX reference, mirroring the PyTorch forward (f32)."""
    lnw, lnb, wada, bada, wfc, bfc = params
    L = lnw.shape[0]
    for l in range(L):
        h = y * jax.nn.sigmoid(y)
        ada = h @ wada[l].T + bada[l]
        shift, scale, gate = jnp.split(ada, 3, axis=1)
        mu = x.mean(-1, keepdims=True)
        var = ((x - mu) ** 2).mean(-1, keepdims=True)
        xn = (x - mu) / jnp.sqrt(var + LN_EPS) * lnw[l] + lnb[l]
        xm = xn * (1.0 + scale[:, None, :]) + shift[:, None, :]
        fc = xm @ wfc[l].T + bfc[l]
        x = x + gate[:, None, :] * fc
    return x


def init_params(key, num_layers, D):
    """Deterministic parameter init mimicking the module's __init__/reset_parameters."""
    ks = jax.random.split(key, 4)
    # norm0 (LayerNorm): weight = 1, bias = 0
    lnw = jnp.ones((num_layers, D), jnp.float32)
    lnb = jnp.zeros((num_layers, D), jnp.float32)
    # adaLN_modulation Linear(D, 3D): PyTorch default init ~ U(-1/sqrt(D), 1/sqrt(D))
    bound = 1.0 / np.sqrt(D)
    wada = jax.random.uniform(ks[0], (num_layers, 3 * D, D), jnp.float32, -bound, bound)
    bada = jax.random.uniform(ks[1], (num_layers, 3 * D), jnp.float32, -bound, bound)
    # fc0.fc Linear(D, D): xavier_uniform(gain=1e-8), bias = 0
    xbound = 1e-8 * np.sqrt(6.0 / (D + D))
    wfc = jax.random.uniform(ks[2], (num_layers, D, D), jnp.float32, -xbound, xbound)
    bfc = jnp.zeros((num_layers, D), jnp.float32)
    return (lnw, lnb, wada, bada, wfc, bfc)


if __name__ == "__main__":
    B, S, D = 2, 8, 32
    num_layers = 3

    key = jax.random.PRNGKey(0)
    kx, ky, kp = jax.random.split(key, 3)
    x = jax.random.normal(kx, (B, S, D), jnp.float32)   # x_y[0]
    y = jax.random.normal(ky, (B, D), jnp.float32)      # x_y[1]
    params = init_params(kp, num_layers, D)

    prep = prepare_params(params)                        # one-time weight transpose + cast
    fwd = jax.jit(transmlp_forward)
    out = jax.block_until_ready(fwd(x, y, prep))

    ref = transmlp_reference(x, y, params)
    np.testing.assert_allclose(np.asarray(out), np.asarray(ref), rtol=1e-5, atol=1e-5)

    print("KERNEL_OK")
</pallas_src>

<mosaic_0001>
module attributes {stable_mosaic.version = 11 : i64} {
  func.func @_kernel_inplace(%arg0: i32, %arg1: i32, %arg2: i32, %arg3: memref<1x8x32xf32, #tpu.memory_space<vmem>>, %arg4: memref<1x1x8x32xf32, #tpu.memory_space<vmem>>, %arg5: memref<3x32x32xbf16, #tpu.memory_space<vmem>>, %arg6: memref<1x8x32xf32, #tpu.memory_space<vmem>>) attributes {dimension_semantics = [#tpu.dimension_semantics<parallel>, #tpu.dimension_semantics<parallel>, #tpu.dimension_semantics<arbitrary>], iteration_bounds = array<i64: 2, 1, 3>, scalar_prefetch = 0 : i64, scratch_operands = 0 : i64, tpu.core_type = #tpu.core_type<tc>, window_params = [{transform_indices = @transform_0, window_bounds = array<i64: 1, 8, 32>}, {transform_indices = @transform_1, window_bounds = array<i64: 1, 1, 8, 32>}, {pipeline_mode = #tpu.pipeline_mode<synchronous>, transform_indices = @transform_2, window_bounds = array<i64: 3, 32, 32>}, {transform_indices = @transform_3, window_bounds = array<i64: 1, 8, 32>}]} {
    %c0_i32 = arith.constant 0 : i32
    %0 = arith.cmpi eq, %arg2, %c0_i32 : i32
    %1 = arith.extui %0 : i1 to i32
    %c0_i32_0 = arith.constant 0 : i32
    %2 = arith.cmpi ne, %1, %c0_i32_0 : i32
    scf.if %2 {
      %c0_18 = arith.constant 0 : index
      %c0_19 = arith.constant 0 : index
      %c0_20 = arith.constant 0 : index
      %48 = vector.load %arg3[%c0_18, %c0_19, %c0_20] : memref<1x8x32xf32, #tpu.memory_space<vmem>>, vector<1x8x32xf32>
      %49 = vector.shape_cast %48 : vector<1x8x32xf32> to vector<8x32xf32>
      %c0_21 = arith.constant 0 : index
      %c0_22 = arith.constant 0 : index
      %c0_23 = arith.constant 0 : index
      %50 = vector.load %arg6[%c0_21, %c0_22, %c0_23] : memref<1x8x32xf32, #tpu.memory_space<vmem>>, vector<1x8x32xf32>
      %51 = vector.shape_cast %50 : vector<1x8x32xf32> to vector<8x32xf32>
      %52 = vector.shape_cast %49 : vector<8x32xf32> to vector<1x8x32xf32>
      tpu.vector_store %arg6[%c0_21, %c0_22, %c0_23], %52 {strides = array<i32>} : memref<1x8x32xf32, #tpu.memory_space<vmem>>, vector<1x8x32xf32>,
    } else {
    }
    %3 = arith.index_cast %arg2 : i32 to index
    %c0 = arith.constant 0 : index
    %c0_1 = arith.constant 0 : index
    %4 = vector.load %arg5[%3, %c0, %c0_1] : memref<3x32x32xbf16, #tpu.memory_space<vmem>>, vector<1x32x32xbf16>
    %5 = vector.shape_cast %4 : vector<1x32x32xbf16> to vector<32x32xbf16>
    %c0_2 = arith.constant 0 : index
    %c0_3 = arith.constant 0 : index
    %c0_4 = arith.constant 0 : index
    %6 = vector.load %arg6[%c0_2, %c0_3, %c0_4] : memref<1x8x32xf32, #tpu.memory_space<vmem>>, vector<1x8x32xf32>
    %7 = vector.shape_cast %6 : vector<1x8x32xf32> to vector<8x32xf32>
    %c0_5 = arith.constant 0 : index
    %c0_6 = arith.constant 0 : index
    %c0_7 = arith.constant 0 : index
    %c0_8 = arith.constant 0 : index
    %8 = vector.load %arg4[%c0_5, %c0_6, %c0_7, %c0_8] : memref<1x1x8x32xf32, #tpu.memory_space<vmem>>, vector<1x1x8x32xf32>
    %9 = vector.shape_cast %8 : vector<1x1x8x32xf32> to vector<8x32xf32>
    %10 = vector.extract_strided_slice %9 {offsets = [0, 0], sizes = [1, 32], strides = [1, 1]} : vector<8x32xf32> to vector<1x32xf32>
    %11 = vector.extract_strided_slice %9 {offsets = [1, 0], sizes = [1, 32], strides = [1, 1]} : vector<8x32xf32> to vector<1x32xf32>
    %12 = vector.extract_strided_slice %9 {offsets = [2, 0], sizes = [1, 32], strides = [1, 1]} : vector<8x32xf32> to vector<1x32xf32>
    %13 = vector.extract_strided_slice %9 {offsets = [3, 0], sizes = [1, 32], strides = [1, 1]} : vector<8x32xf32> to vector<1x32xf32>
    %cst = arith.constant dense<0.000000e+00> : vector<8xf32>
    %14 = vector.multi_reduction <add>, %7, %cst [1] : vector<8x32xf32> to vector<8xf32>
    %15 = vector.shape_cast %14 : vector<8xf32> to vector<8x1xf32>
    %cst_9 = arith.constant 3.200000e+01 : f32
    %16 = vector.broadcast %cst_9 : f32 to vector<8x1xf32>
    %17 = arith.divf %15, %16 : vector<8x1xf32>
    %18 = arith.mulf %7, %7 : vector<8x32xf32>
    %cst_10 = arith.constant dense<0.000000e+00> : vector<8xf32>
    %19 = vector.multi_reduction <add>, %18, %cst_10 [1] : vector<8x32xf32> to vector<8xf32>
    %20 = vector.shape_cast %19 : vector<8xf32> to vector<8x1xf32>
    %cst_11 = arith.constant 3.200000e+01 : f32
    %21 = vector.broadcast %cst_11 : f32 to vector<8x1xf32>
    %22 = arith.divf %20, %21 : vector<8x1xf32>
    %23 = arith.mulf %17, %17 : vector<8x1xf32>
    %24 = arith.subf %22, %23 : vector<8x1xf32>
    %cst_12 = arith.constant 0.000000e+00 : f32
    %25 = vector.broadcast %cst_12 : f32 to vector<8x1xf32>
    %26 = arith.maximumf %24, %25 : vector<8x1xf32>
    %27 = vector.broadcast %17 : vector<8x1xf32> to vector<8x32xf32>
    %28 = arith.subf %7, %27 : vector<8x32xf32>
    %cst_13 = arith.constant 9.99999974E-6 : f32
    %29 = vector.broadcast %cst_13 : f32 to vector<8x1xf32>
    %30 = arith.addf %26, %29 : vector<8x1xf32>
    %31 = math.rsqrt %30 : vector<8x1xf32>
    %32 = vector.broadcast %31 : vector<8x1xf32> to vector<8x32xf32>
    %33 = arith.mulf %28, %32 : vector<8x32xf32>
    %34 = vector.broadcast %11 : vector<1x32xf32> to vector<8x32xf32>
    %35 = arith.mulf %33, %34 : vector<8x32xf32>
    %36 = vector.broadcast %10 : vector<1x32xf32> to vector<8x32xf32>
    %37 = arith.addf %35, %36 : vector<8x32xf32>
    %38 = arith.truncf %37 : vector<8x32xf32> to vector<8x32xbf16>
    %cst_14 = arith.constant dense<0.000000e+00> : vector<8x32xf32>
    %39 = tpu.matmul %38, %5, %cst_14 {dimension_numbers = #tpu.dot_dimension_numbers<[1], [0], [0], [1], [0, 0, 1, 1], [], []>} : vector<8x32xbf16>, vector<32x32xbf16>, vector<8x32xf32> -> vector<8x32xf32>
    %40 = vector.broadcast %12 : vector<1x32xf32> to vector<8x32xf32>
    %41 = arith.mulf %40, %39 : vector<8x32xf32>
    %42 = arith.addf %7, %41 : vector<8x32xf32>
    %43 = vector.broadcast %13 : vector<1x32xf32> to vector<8x32xf32>
    %44 = arith.addf %42, %43 : vector<8x32xf32>
    %c0_15 = arith.constant 0 : index
    %c0_16 = arith.constant 0 : index
    %c0_17 = arith.constant 0 : index
    %45 = vector.load %arg6[%c0_15, %c0_16, %c0_17] : memref<1x8x32xf32, #tpu.memory_space<vmem>>, vector<1x8x32xf32>
    %46 = vector.shape_cast %45 : vector<1x8x32xf32> to vector<8x32xf32>
    %47 = vector.shape_cast %44 : vector<8x32xf32> to vector<1x8x32xf32>
    tpu.vector_store %arg6[%c0_15, %c0_16, %c0_17], %47 {strides = array<i32>} : memref<1x8x32xf32, #tpu.memory_space<vmem>>, vector<1x8x32xf32>,
    return
  }
  func.func @transform_0(%arg0: i32, %arg1: i32, %arg2: i32) -> (i32, i32, i32) {
    %c0_i32 = arith.constant 0 : i32
    %c0_i32_0 = arith.constant 0 : i32
    return %arg0, %arg1, %c0_i32 : i32, i32, i32
  }
  func.func @transform_1(%arg0: i32, %arg1: i32, %arg2: i32) -> (i32, i32, i32, i32) {
    %c0_i32 = arith.constant 0 : i32
    %c0_i32_0 = arith.constant 0 : i32
    %c0_i32_1 = arith.constant 0 : i32
    return %arg2, %arg0, %c0_i32, %c0_i32_0 : i32, i32, i32, i32
  }
  func.func @transform_2(%arg0: i32, %arg1: i32, %arg2: i32) -> (i32, i32, i32) {
    %c0_i32 = arith.constant 0 : i32
    %c0_i32_0 = arith.constant 0 : i32
    %c0_i32_1 = arith.constant 0 : i32
    %c0_i32_2 = arith.constant 0 : i32
    return %c0_i32, %c0_i32_0, %c0_i32_1 : i32, i32, i32
  }
  func.func @transform_3(%arg0: i32, %arg1: i32, %arg2: i32) -> (i32, i32, i32) {
    %c0_i32 = arith.constant 0 : i32
    %c0_i32_0 = arith.constant 0 : i32
    return %arg0, %arg1, %c0_i32 : i32, i32, i32
  }
}

</mosaic_0001>

<llo_original>
// kernel: transmlp_forward.1
$region0: #{transmlp_forward.1}
  #allocation0 [shape = 'u32[]', space=smem, size = 0x4, offset = 0x4, fixed_abs, tag = 'smem constant byte address 0x4 - core index']
  #allocation1 [shape = 'u32[144,128]{1,0:T(1,128)}', space=vmem, size = 0x12000, scoped, tag = 'internal scratch']
  %s0 = inlined_call_operand.vmem [shape: f32[2,8,32], index: 0, kind: input, shape index: {}]
  %s1 = inlined_call_operand.vmem [shape: f32[3,2,8,32], index: 1, kind: input, shape index: {}]
  %s2 = inlined_call_operand.vmem [shape: bf16[3,32,32], index: 2, kind: input, shape index: {}]
  %s3 = inlined_call_operand.hbm [shape: f32[2,8,32], index: 3, kind: output, shape index: {}]
  %s4 = sld [smem:[#allocation0]]
  $region49: #{transmlp_forward.1} parent=0
    _
  %s6 = ssub.s32 1, %s4
  %s7 = scalar_select 0, %s6, %s4
  $region1: #{transmlp_forward.1} parent=0
    #allocation2 [shape = 'u8[8192]{0}', space=vmem, size = 0x2000, scoped, tag = 'output window, operand 0']
    #allocation3 [shape = 's32[2]{0}', space=sflag, size = 0x8, scoped, tag = 'scoped memory for transmlp_forward.1']
    %8 = vsyncpa [#allocation3], 0
    %s9 = scalar_lea.sflag [#allocation3], 1
    %10 = vsyncpa %s9, 0
    loop: start=0, step=1, limit=8
    $region2: #{transmlp_forward.1} parent=1 // loop_pre_header
      _
    $region3: #{transmlp_forward.1} parent=1 // loop_header
      %s12 = sphi 0, %s16
      %p13 = scmp.ge.s32.totalorder %s12, 8
      %s19 = sphi 0, %s38
      %s20 = sphi 0, %s34
      %s21 = sphi 0, %s30
      %s22 = sphi 0, %s19
      %s23 = sphi 0, %s20
      %s24 = sphi 0, %s21
      %s25 = sphi 0, %s22
      %s26 = sphi 0, %s23
      %s27 = sphi 0, %s24
      %s43 = sphi 0, %s45
      %s46 = sphi 0, %s43
      %s47 = sphi 0, %s46
      %s63 = sphi 0, %s47
      %s71 = sphi 0, %s73
      %s74 = sphi 0, %s71
      %s75 = sphi 0, %s74
      %s91 = sphi 0, %s75
      %s95 = sphi 0, %s95
      %s97 = sphi 0, %s95
      %s98 = sphi 0, %s97
      %s112 = sphi 0, %s98
      %s120 = sphi 0, %s122
      %s123 = sphi 0, %s120
      %s124 = sphi 0, %s123
      %s140 = sphi 0, %s124
    $region4: #{transmlp_forward.1} parent=1 // loop_header_branch
      %15 = sbr.rel (%p13) target = $region8
    $region5: #{transmlp_forward.1} parent=1 // loop_body
      %s17 = ssub.s32 %s12, 1
      %s18 = ssub.s32 %s12, 2
      %s28 = sadd.s32 1, %s21
      %p29 = scmp.ge.s32.totalorder %s28, 3
      %s30 = scalar_select %p29, 0, %s28
      %s31 = sadd.s32 1, %s20
      %s32 = scalar_select %p29, %s31, %s20
      %p33 = scmp.ge.s32.totalorder %s32, 1
      %s34 = scalar_select %p33, 0, %s32
      %s35 = sadd.s32 1, %s19
      %s36 = scalar_select %p33, %s35, %s19
      %p37 = scmp.ge.s32.totalorder %s36, 2
      %s38 = scalar_select %p37, 0, %s36
      %s39 = ssub.s32 %s19, %s38
      %s40 = ssub.s32 %s20, %s34
      %s41 = sor.u32 %s39, %s40
      %p42 = scmp.eq.s32.totalorder %s41, 0
      %s44 = sadd.s32 %s43, 1
      %s45 = scalar_select %p42, %s43, %s44
      %p48 = pneg %p42
      %p49 = scmp.eq.s32.totalorder %s12, 5
      %p50 = por %p48, %p49
      %p51 = scmp.ne.s32.totalorder %s43, %s46
      %p52 = scmp.eq.s32.totalorder %s12, 0
      %p53 = por %p51, %p52
      %p54 = scmp.ne.s32.totalorder %s43, %s46
      %p55 = scmp.eq.s32.totalorder %s17, 5
      %p56 = por %p54, %p55
      %p57 = scmp.ne.s32.totalorder %s46, %s47
      %p58 = scmp.eq.s32.totalorder %s17, 0
      %p59 = por %p57, %p58
      %p60 = scmp.ne.s32.totalorder %s46, %s47
      %p61 = scmp.eq.s32.totalorder %s18, 5
      %p62 = por %p60, %p61
      %p64 = scmp.ne.s32.totalorder %s47, %s63
      %p65 = scmp.eq.s32.totalorder %s18, 0
      %p66 = por %p64, %p65
      %s67 = ssub.s32 %s21, %s30
      %s68 = ssub.s32 %s19, %s38
      %s69 = sor.u32 %s67, %s68
      %p70 = scmp.eq.s32.totalorder %s69, 0
      %s72 = sadd.s32 %s71, 1
      %s73 = scalar_select %p70, %s71, %s72
      %p76 = pneg %p70
      %p77 = scmp.eq.s32.totalorder %s12, 5
      %p78 = por %p76, %p77
      %p79 = scmp.ne.s32.totalorder %s71, %s74
      %p80 = scmp.eq.s32.totalorder %s12, 0
      %p81 = por %p79, %p80
      %p82 = scmp.ne.s32.totalorder %s71, %s74
      %p83 = scmp.eq.s32.totalorder %s17, 5
      %p84 = por %p82, %p83
      %p85 = scmp.ne.s32.totalorder %s74, %s75
      %p86 = scmp.eq.s32.totalorder %s17, 0
      %p87 = por %p85, %p86
      %p88 = scmp.ne.s32.totalorder %s74, %s75
      %p89 = scmp.eq.s32.totalorder %s18, 5
      %p90 = por %p88, %p89
      %p92 = scmp.ne.s32.totalorder %s75, %s91
      %p93 = scmp.eq.s32.totalorder %s18, 0
      %p94 = por %p92, %p93
      %s96 = sadd.s32 %s95, 1
      %p99 = scmp.eq.s32.totalorder %s12, 5
      %p100 = scmp.ne.s32.totalorder %s95, %s97
      %p101 = scmp.eq.s32.totalorder %s12, 0
      %p102 = por %p100, %p101
      %p103 = scmp.ne.s32.totalorder %s95, %s97
      %p104 = scmp.eq.s32.totalorder %s17, 5
      %p105 = por %p103, %p104
      %p106 = scmp.ne.s32.totalorder %s97, %s98
      %p107 = scmp.eq.s32.totalorder %s17, 0
      %p108 = por %p106, %p107
      %p109 = scmp.ne.s32.totalorder %s97, %s98
      %p110 = scmp.eq.s32.totalorder %s18, 5
      %p111 = por %p109, %p110
      %p113 = scmp.ne.s32.totalorder %s98, %s112
      %p114 = scmp.eq.s32.totalorder %s18, 0
      %p115 = por %p113, %p114
      %s116 = ssub.s32 %s19, %s38
      %s117 = ssub.s32 %s20, %s34
      %s118 = sor.u32 %s116, %s117
      %p119 = scmp.eq.s32.totalorder %s118, 0
      %s121 = sadd.s32 %s120, 1
      %s122 = scalar_select %p119, %s120, %s121
      %p125 = pneg %p119
      %p126 = scmp.eq.s32.totalorder %s12, 5
      %p127 = por %p125, %p126
      %p128 = scmp.ne.s32.totalorder %s120, %s123
      %p129 = scmp.eq.s32.totalorder %s12, 0
      %p130 = por %p128, %p129
      %p131 = scmp.ne.s32.totalorder %s120, %s123
      %p132 = scmp.eq.s32.totalorder %s17, 5
      %p133 = por %p131, %p132
      %p134 = scmp.ne.s32.totalorder %s123, %s124
      %p135 = scmp.eq.s32.totalorder %s17, 0
      %p136 = por %p134, %p135
      %p137 = scmp.ne.s32.totalorder %s123, %s124
      %p138 = scmp.eq.s32.totalorder %s18, 5
      %p139 = por %p137, %p138
      %p141 = scmp.ne.s32.totalorder %s124, %s140
      %p142 = scmp.eq.s32.totalorder %s18, 0
      %p143 = por %p141, %p142
      %p144 = scmp.le.s32.totalorder 1, %s12
      %p145 = scmp.lt.s32.totalorder %s12, 7
      %p146 = pnand %p144, %p145
      %p147 = pneg %p146
      // Predicated region
      $region9: #{transmlp_forward.1} parent=5 // pred_check
        _
      $region10: #{transmlp_forward.1} parent=5 // pred_check_branch
        %149 = sbr.rel (%p146) target = $region12
      $region11: #{transmlp_forward.1} parent=5 // pred_region
        %s150 = ssub.s32 %s12, 1
        // Predicated region
        $region13: #{transmlp_forward.1} parent=11 // pred_check
          %p151 = pneg %p108
        $region14: #{transmlp_forward.1} parent=11 // pred_check_branch
          %153 = sbr.rel (%p151) target = $region16
        $region15: #{transmlp_forward.1} parent=11 // pred_region
          _
        $region16: #{transmlp_forward.1} parent=11 // pred_fallthru
          _
      $region12: #{transmlp_forward.1} parent=5 // pred_fallthru
        _
      %p154 = scmp.lt.s32.totalorder %s12, 6
      // Predicated region
      $region17: #{transmlp_forward.1} parent=5 // pred_check
        %p155 = pneg %p154
      $region18: #{transmlp_forward.1} parent=5 // pred_check_branch
        %157 = sbr.rel (%p155) target = $region20
      $region19: #{transmlp_forward.1} parent=5 // pred_region
        // Predicated region
        $region21: #{transmlp_forward.1} parent=19 // pred_check
          %p158 = pneg %p53
        $region22: #{transmlp_forward.1} parent=19 // pred_check_branch
          %160 = sbr.rel (%p158) target = $region24
        $region23: #{transmlp_forward.1} parent=19 // pred_region
          %p161 = scmp.lt.s32.totalorder %s19, 1
          %s162 = scalar_select %p161, %s19, 1
          %p163 = scmp.lt.s32.totalorder %s20, 0
          %s164 = scalar_select %p163, %s20, 0
          %s165 = sadd.s32 %s164, %s162
          %s166 = smul.addr %s165, 8
          %s167 = scalar_lea.vmem %s0, %s166
        $region24: #{transmlp_forward.1} parent=19 // pred_fallthru
          _
        // Predicated region
        $region25: #{transmlp_forward.1} parent=19 // pred_check
          %p168 = pneg %p81
        $region26: #{transmlp_forward.1} parent=19 // pred_check_branch
          %170 = sbr.rel (%p168) target = $region28
        $region27: #{transmlp_forward.1} parent=19 // pred_region
          %p171 = scmp.lt.s32.totalorder %s21, 2
          %s172 = scalar_select %p171, %s21, 2
          %p173 = scmp.lt.s32.totalorder %s19, 1
          %s174 = scalar_select %p173, %s19, 1
          %s175 = smul.addr %s172, 2
          %s176 = sadd.s32 %s174, %s175
          %s177 = smul.addr %s176, 8
          %s178 = scalar_lea.vmem %s1, %s177
        $region28: #{transmlp_forward.1} parent=19 // pred_fallthru
          _
      $region20: #{transmlp_forward.1} parent=5 // pred_fallthru
        _
      %p179 = scmp.le.s32.totalorder 1, %s12
      %p180 = scmp.lt.s32.totalorder %s12, 7
      %p181 = pnand %p179, %p180
      %p182 = pneg %p181
      // Predicated region
      $region29: #{transmlp_forward.1} parent=5 // pred_check
        _
      $region30: #{transmlp_forward.1} parent=5 // pred_check_branch
        %184 = sbr.rel (%p181) target = $region32
      $region31: #{transmlp_forward.1} parent=5 // pred_region
        %s185 = ssub.s32 %s12, 1
        %p186 = scmp.lt.s32.totalorder %s22, 1
        %s187 = scalar_select %p186, %s22, 1
        %p188 = scmp.lt.s32.totalorder %s23, 0
        %s189 = scalar_select %p188, %s23, 0
        %s190 = sadd.s32 %s189, %s187
        %s191 = smul.addr %s190, 8
        %s192 = scalar_lea.vmem %s0, %s191
        %p193 = pneg %p59
        %p194 = pneg %p56
        %p195 = scmp.lt.s32.totalorder %s24, 2
        %s196 = scalar_select %p195, %s24, 2
        %p197 = scmp.lt.s32.totalorder %s22, 1
        %s198 = scalar_select %p197, %s22, 1
        %s199 = smul.addr %s196, 2
        %s200 = sadd.s32 %s198, %s199
        %s201 = smul.addr %s200, 8
        %s202 = scalar_lea.vmem %s1, %s201
        %p203 = pneg %p87
        %p204 = pneg %p84
        %p205 = pneg %p108
        %p206 = pneg %p105
        %p207 = pneg %p136
        %p208 = pneg %p133
        %s209 = sand.u32 %s123, 1
        %s210 = scalar_lea.sflag [#allocation3], %s209
        %s211 = sand.u32 %s123, 1
        %s212 = smul.addr %s211, 8
        %s213 = scalar_lea.vmem [#allocation2], %s212
        %p214 = scmp.lt.s32.totalorder %s22, 1
        %s215 = scalar_select %p214, %s22, 1
        %p216 = scmp.lt.s32.totalorder %s23, 0
        %s217 = scalar_select %p216, %s23, 0
        %s218 = sadd.s32 %s217, %s215
        %s219 = smul.addr %s218, 8
        %s220 = scalar_lea.vmem %s0, %s219
        %p221 = scmp.lt.s32.totalorder %s24, 2
        %s222 = scalar_select %p221, %s24, 2
        %p223 = scmp.lt.s32.totalorder %s22, 1
        %s224 = scalar_select %p223, %s22, 1
        %s225 = smul.addr %s222, 2
        %s226 = sadd.s32 %s224, %s225
        %s227 = smul.addr %s226, 8
        %s228 = scalar_lea.vmem %s1, %s227
        %p230 = scmp.eq.s32.totalorder %s24, 0
        // Predicated region
        $region33: #{transmlp_forward.1} parent=31 // pred_check
          %p231 = pneg %p230
        $region34: #{transmlp_forward.1} parent=31 // pred_check_branch
          %233 = sbr.rel (%p231) target = $region36
        $region35: #{transmlp_forward.1} parent=31 // pred_region
          %v234 = vld [vmem:[%s220] sm:$0xff]
          %vm235 = vcmask 261120
          %236 = vst.msk [vmem:[%s213] sm:$0xff] %vm235, %v234
        $region36: #{transmlp_forward.1} parent=31 // pred_fallthru
          _
        %s237 = smul.u32 %s24, 4
        %s238 = smul.addr %s237, 4
        %s239 = scalar_lea.vmem %s2, %s238
        %v240 = vld [vmem:[%s239] sm:$0xf]
        %v241 = vld [vmem:[%s239 + $0x4] sm:$0xf]
        %v242 = vld [vmem:[%s239 + $0x8] sm:$0xf]
        %v243 = vld [vmem:[%s239 + $0xc] sm:$0xf]
        %v244 = vld [vmem:[%s213] sm:$0xff]
        %v245 = vld [vmem:[%s228] sm:$0xff]
        %vm246 = vcmask 261120
        %v247 = vsel %vm246, %v244, 0.0
        %248 = vadd.xlane.f32.xlu0 %v247
        %v249 = vpop.xlane.xlu0 %248
        %v250 = vrcp.pop 32.0
        %v251 = vmul.f32 %v249, %v250
        %v252 = vmul.f32 %v244, %v244
        %v253 = vsel %vm246, %v252, 0.0
        %254 = vadd.xlane.f32.xlu0 %v253
        %v255 = vpop.xlane.xlu0 %254
        %v256 = vmul.f32 %v255, %v250
        %v257 = vmul.f32 %v251, %v251
        %v258 = vsub.f32 %v256, %v257
        %v259 = vmax.f32 %v258, 0.0
        %v260 = vsub.f32 %v244, %v251
        %v261 = vadd.f32 %v259, 1e-05
        %v262 = vrsqrt.pop %v261
        %v263 = vmul.f32 %v260, %v262
        %v264 = vlaneseq
        %v265 = vshrl.u32 %v264, 7
        %v266 = vsub.s32 1, %v265
        %v267 = vrot.slane %v245, %v266
        %v268 = vmul.f32 %v263, %v267
        %v269 = vlaneseq
        %v270 = vshrl.u32 %v269, 7
        %v271 = vsub.s32 0, %v270
        %v272 = vrot.slane %v245, %v271
        %v273 = vadd.f32 %v268, %v272
        %v274 = vpack.c.bf16 %v273, %v273
        %v279 = vunpack.c.l.b16 %v240
        %v280 = vunpack.c.l.b16 %v241
        %v281 = vunpack.c.l.b16 %v242
        %v282 = vunpack.c.l.b16 %v243
        %v283 = vpack.c.b16 %v280, %v279
        %v284 = vpack.c.b16 %v282, %v281
        %v288 = vsel %vm246, %v274, 0
        %290 = vmatprep.subr.bf16.mxu0 0
        %291 = vmatpush1.bf16.msra.mxu0 %v283
        %292 = vmatprep.subr.bf16.mxu0 0
        %293 = vmatpush1.bf16.msra.mxu0 %v284
        %294 = vmatprep.subr.bf16.mxu0 0
        %295 = vmatpush1.bf16.msra.mxu0 0
        %296 = vmatprep.subr.bf16.mxu0 0
        %297 = vmatpush1.bf16.msra.mxu0 0
        %298 = vmatprep.subr.bf16.mxu0 0
        %299 = vmatpush1.bf16.msra.mxu0 0
        %300 = vmatprep.subr.bf16.mxu0 0
        %301 = vmatpush1.bf16.msra.mxu0 0
        %302 = vmatprep.subr.bf16.mxu0 0
        %303 = vmatpush1.bf16.msra.mxu0 0
        %304 = vmatprep.subr.bf16.mxu0 0
        %305 = vmatpush1.bf16.msra.mxu0 0
        %306 = vmatprep.subr.bf16.mxu0 0
        %307 = vmatpush1.bf16.msra.mxu0 0
        %308 = vmatprep.subr.bf16.mxu0 0
        %309 = vmatpush1.bf16.msra.mxu0 0
        %310 = vmatprep.subr.bf16.mxu0 0
        %311 = vmatpush1.bf16.msra.mxu0 0
        %312 = vmatprep.subr.bf16.mxu0 0
        %313 = vmatpush1.bf16.msra.mxu0 0
        %314 = vmatprep.subr.bf16.mxu0 0
        %315 = vmatpush1.bf16.msra.mxu0 0
        %316 = vmatprep.subr.bf16.mxu0 0
        %317 = vmatpush1.bf16.msra.mxu0 0
        %318 = vmatprep.subr.bf16.mxu0 0
        %319 = vmatpush1.bf16.msra.mxu0 0
        %320 = vmatprep.subr.bf16.mxu0 0
        %321 = vmatpush1.bf16.msra.mxu0 0
        %322 = vmatprep.mubr.bf16.mxu0 0
        %323 = vmatmul.mubr.bf16.gmra.mrb[0].mxu0 %v288
        %v324 = vpop.f32.mrb[0].mxu0
        %v325 = vadd.f32 0.0, %v324
        %v326 = vpop.f32.mrb[0].mxu0
        %v327 = vpop.f32.mrb[0].mxu0
        %v328 = vpop.f32.mrb[0].mxu0
        %329 = vdwg.mxu0
        %v330 = vlaneseq
        %v331 = vshrl.u32 %v330, 7
        %v332 = vsub.s32 2, %v331
        %v333 = vrot.slane %v245, %v332
        %v334 = vmul.f32 %v333, %v325
        %v335 = vadd.f32 %v244, %v334
        %v336 = vlaneseq
        %v337 = vshrl.u32 %v336, 7
        %v338 = vsub.s32 3, %v337
        %v339 = vrot.slane %v245, %v338
        %v340 = vadd.f32 %v335, %v339
        %341 = vst.msk [vmem:[%s213] sm:$0xff] %vm246, %v340
        %s342 = sand.u32 %s123, 1
        %s343 = scalar_lea.sflag [#allocation3], %s342
        %s344 = sand.u32 %s123, 1
        %s345 = smul.addr %s344, 8
        %s346 = scalar_lea.vmem [#allocation2], %s345
        // Predicated region
        $region37: #{transmlp_forward.1} parent=31 // pred_check
          %p347 = pneg %p133
        $region38: #{transmlp_forward.1} parent=31 // pred_check_branch
          %349 = sbr.rel (%p347) target = $region40
        $region39: #{transmlp_forward.1} parent=31 // pred_region
          %s351 = ssub.s32 128, 128
          %352 = vsyncadd %s343, %s351
          %s353 = sadd.s32 %s23, %s22
          %s354 = smul.addr %s353, 128
          %s355 = scalar_lea.hbm %s3, %s354
          %s357 = sshll.u32 %s346, 4
          %s358 = int_to_ptr.vmem [resolvable:$true] %s357
          %360 = dma.vmem_to_hbm [thread:$0]  %s358, 128, %s355, %s343
        $region40: #{transmlp_forward.1} parent=31 // pred_fallthru
          _
      $region32: #{transmlp_forward.1} parent=5 // pred_fallthru
        _
      %p361 = scmp.le.s32.totalorder 2, %s12
      // Predicated region
      $region41: #{transmlp_forward.1} parent=5 // pred_check
        %p362 = pneg %p361
      $region42: #{transmlp_forward.1} parent=5 // pred_check_branch
        %364 = sbr.rel (%p362) target = $region44
      $region43: #{transmlp_forward.1} parent=5 // pred_region
        %s365 = ssub.s32 %s12, 2
        // Predicated region
        $region45: #{transmlp_forward.1} parent=43 // pred_check
          %p366 = pneg %p139
        $region46: #{transmlp_forward.1} parent=43 // pred_check_branch
          %368 = sbr.rel (%p366) target = $region48
        $region47: #{transmlp_forward.1} parent=43 // pred_region
          %s369 = sand.u32 %s124, 1
          %s370 = scalar_lea.sflag [#allocation3], %s369
          %s371 = sand.u32 %s124, 1
          %s372 = smul.addr %s371, 8
          %s373 = scalar_lea.vmem [#allocation2], %s372
          %374 = dma.done %s370, 128
        $region48: #{transmlp_forward.1} parent=43 // pred_fallthru
          _
      $region44: #{transmlp_forward.1} parent=5 // pred_fallthru
        _
    $region6: #{transmlp_forward.1} parent=1 // loop_footer
      %s16 = sadd.s32 1, %s12
    $region7: #{transmlp_forward.1} parent=1 // loop_footer_branch
      %11 = sbr.rel target = $region3
    $region8: #{transmlp_forward.1} parent=1 // loop_exit
      _
    %375 = vsyncpa [#allocation3], 1
    %s376 = scalar_lea.sflag [#allocation3], 1
    %377 = vsyncpa %s376, 1

</llo_original>
